<compile_context>
chip_gen: v5e
topology: v5e:2x2
jax: 0.10.0
libtpu: 0.0.40
codegen_flags: <defaults>
</compile_context>

<pallas_src>
import functools

import jax
import jax.numpy as jnp
from jax.experimental import pallas as pl
from jax.experimental.pallas import tpu as pltpu


# --------------------------- roll-convention probe ----------------------------

@functools.lru_cache(maxsize=None)
def _roll_shift_sign() -> int:
    """One-time device probe of pltpu.roll's shift convention.

    Returns +1 if pltpu.roll matches jnp.roll (rolled[i] == x[(i - shift) % n]),
    else -1.  Must first be called eagerly (prepare_params does this); the
    cached python int is then reused inside jit-traced code.
    """
    def probe(x_ref, o_ref):
        o_ref[...] = pltpu.roll(x_ref[...], shift=1, axis=1)

    x = jnp.broadcast_to(jnp.arange(128, dtype=jnp.float32)[None, :], (8, 128))
    out = pl.pallas_call(
        probe, out_shape=jax.ShapeDtypeStruct((8, 128), jnp.float32))(x)
    return 1 if float(jax.device_get(out)[0, 0]) == 127.0 else -1


# ------------------------------- Pallas kernel --------------------------------

def _fcn_mask_head_kernel(x_ref, mk_ref, cw_ref, cb_ref, wd_ref, bd_ref,
                          wl_ref, bl_ref, o_ref, *, tap_shifts):
    """Fused 4x(conv3x3+ReLU) -> deconv(2,2)+ReLU -> 1x1 logits.

    Layout: channels in sublanes, flat pixels of whole images in lanes.
      x_ref : (C, M)      bf16  input activations
      mk_ref: (9, M)      f32   per-tap boundary masks (1 = valid)
      cw_ref: (L, C, 9C)  bf16  conv weights, col = (ky*3+kx)*C + cin
      cb_ref: (L, C, 1)   f32   conv biases
      wd_ref: (4C, C)     bf16  deconv weight, row = (ky*2+kx)*C + cout
      bd_ref: (4C, 1)     f32   deconv bias (tiled per tap)
      wl_ref: (4K, 4C)    bf16  tap-block-diagonal 1x1 logits weight
      bl_ref: (4K, 1)     f32   logits bias (tiled per tap)
      o_ref : (4K, M)     f32   logits, lane-dense
    """
    C, M = x_ref.shape
    L = cw_ref.shape[0]

    masks = mk_ref[...]                        # (9, M) f32
    act = x_ref[...].astype(jnp.float32)       # f32 so the lane-rolls are 32-bit

    for l in range(L):
        # 3x3 taps via lane rolls of the flat pixel axis + boundary masks
        # (no padded scratch, no strided slices, no cross-lane concat).
        taps = []
        for t, sh in enumerate(tap_shifts):
            if t == 4:                         # centre tap: no shift, mask == 1
                tap = act
            else:
                tap = pltpu.roll(act, shift=sh, axis=1) * masks[t:t + 1, :]
            taps.append(tap.astype(jnp.bfloat16))
        a = jnp.concatenate(taps, axis=0)      # (9C, M) bf16, whole-vreg sublane concat
        y = jnp.dot(cw_ref[l], a, preferred_element_type=jnp.float32)     # MXU
        act = jnp.maximum(y + cb_ref[l], 0.0)                              # (C, M) f32

    # ConvTranspose2d(k=2, s=2): stride == kernel -> 4 independent per-pixel
    # taps, produced already transposed (no 128x128 transpose needed).
    y = jnp.dot(wd_ref[...], act.astype(jnp.bfloat16),
                preferred_element_type=jnp.float32)                        # (4C, M)
    y = jnp.maximum(y + bd_ref[...], 0.0)

    # 1x1 logits conv on the tap-stacked activation -> lane-dense (4K, M).
    logits = jnp.dot(wl_ref[...], y.astype(jnp.bfloat16),
                     preferred_element_type=jnp.float32)
    o_ref[...] = logits + bl_ref[...]


# ------------------------------- JAX wrappers ---------------------------------

def _images_per_block(n, hw):
    """Smallest whole-image block whose pixel count is lane-dense (mult of 128)."""
    for ipb in range(1, n + 1):
        if n % ipb == 0 and (ipb * hw) % 128 == 0:
            return ipb
    return n


def prepare_params(params):
    """One-time packing of weights into the kernel's layouts (run outside jit)."""
    _roll_shift_sign()   # trigger the cached roll-convention probe eagerly

    convs = params["convs"]
    C = convs[0][0].shape[2]
    cout = convs[0][0].shape[3]
    assert cout == C, "fused path assumes in_channels == conv_out_channels"

    # HWIO (ky,kx,cin,cout) -> (cout, 9*cin), col = (ky*3+kx)*cin + ci
    cw = jnp.stack([w.reshape(9 * C, cout).T for (w, _) in convs]
                   ).astype(jnp.bfloat16)                          # (L, C, 9C)
    cb = jnp.stack([b.reshape(cout, 1) for (_, b) in convs]
                   ).astype(jnp.float32)                           # (L, C, 1)

    # deconv (ky,kx,ci,co) -> (4*cout, cin), row = (ky*2+kx)*cout + co
    wd = params["deconv_w"].transpose(0, 1, 3, 2).reshape(4 * cout, C)
    wd = wd.astype(jnp.bfloat16)
    bd = jnp.tile(params["deconv_b"], 4).reshape(4 * cout, 1).astype(jnp.float32)

    wl = params["logits_w"].astype(jnp.float32)                    # (C, K)
    K = wl.shape[-1]
    wlb = jnp.kron(jnp.eye(4, dtype=jnp.float32), wl.T).astype(jnp.bfloat16)
    blb = jnp.tile(params["logits_b"], 4).reshape(4 * K, 1).astype(jnp.float32)

    return {"cw": cw, "cb": cb, "wd": wd, "bd": bd, "wl": wlb, "bl": blb}


def fcn_mask_head_forward(prep, x_nchw):
    """NCHW in (PyTorch convention) -> NCHW mask logits out."""
    N, C, H, W = x_nchw.shape
    assert prep["wd"].shape[1] == C
    K = prep["wl"].shape[0] // 4
    L = prep["cw"].shape[0]
    HW = H * W
    M = N * HW

    # pixels-in-lanes layout; bf16 input (same rounding point as the MXU cast)
    x_cm = jnp.transpose(x_nchw, (1, 0, 2, 3)).reshape(C, M).astype(jnp.bfloat16)

    ipb = _images_per_block(N, HW)     # whole images per grid block
    TM = ipb * HW                      # pixels per block (lane-dense when possible)
    grid = (N // ipb,)

    # per-tap validity masks; identical for every block (blocks hold whole images)
    lane = jnp.arange(TM, dtype=jnp.int32)
    yy = (lane % HW) // W
    xx = lane % W
    rows = []
    for dy in (-1, 0, 1):
        for dx in (-1, 0, 1):
            rows.append((yy + dy >= 0) & (yy + dy < H) &
                        (xx + dx >= 0) & (xx + dx < W))
    masks = jnp.stack(rows).astype(jnp.float32)                    # (9, TM)

    sgn = _roll_shift_sign()           # cached python int, probed in prepare_params
    shifts = tuple((sgn * -(dy * W + dx)) % TM
                   for dy in (-1, 0, 1) for dx in (-1, 0, 1))

    kernel = functools.partial(_fcn_mask_head_kernel, tap_shifts=shifts)
    out4 = pl.pallas_call(
        kernel,
        out_shape=jax.ShapeDtypeStruct((4 * K, M), jnp.float32),
        grid=grid,
        in_specs=[
            pl.BlockSpec((C, TM), lambda i: (0, i)),            # x (advances)
            pl.BlockSpec((9, TM), lambda i: (0, 0)),            # masks (resident)
            pl.BlockSpec((L, C, 9 * C), lambda i: (0, 0, 0)),   # conv weights (resident)
            pl.BlockSpec((L, C, 1), lambda i: (0, 0, 0)),       # conv biases
            pl.BlockSpec((4 * C, C), lambda i: (0, 0)),         # deconv weight^T
            pl.BlockSpec((4 * C, 1), lambda i: (0, 0)),         # deconv bias
            pl.BlockSpec((4 * K, 4 * C), lambda i: (0, 0)),     # logits weight
            pl.BlockSpec((4 * K, 1), lambda i: (0, 0)),         # logits bias
        ],
        out_specs=pl.BlockSpec((4 * K, TM), lambda i: (0, i)),
        compiler_params=pltpu.CompilerParams(
            dimension_semantics=("parallel",)),                 # megacore on v7x
    )(x_cm, masks, prep["cw"], prep["cb"], prep["wd"], prep["bd"],
      prep["wl"], prep["bl"])

    # out4[(ky*2+kx)*K + k, n*H*W + y*W + x] -> mask[n, k, 2y+ky, 2x+kx]
    # TODO(synk): at real RoI counts fuse this epilogue into the consumer to
    # avoid a second full-tensor HBM pass.
    out = out4.reshape(2, 2, K, N, H, W).transpose(3, 2, 4, 0, 5, 1)
    return out.reshape(N, K, 2 * H, 2 * W)


# ------------------------------ parameter init --------------------------------

def init_params(key, num_convs=4, in_channels=32, conv_out_channels=32,
                conv_kernel_size=3, num_classes=1):
    """Deterministic synthetic init (kaiming-style std, small biases)."""
    params = {"convs": []}
    cin = in_channels
    for _ in range(num_convs):
        key, k1, k2 = jax.random.split(key, 3)
        std = (2.0 / (conv_out_channels * conv_kernel_size ** 2)) ** 0.5
        w = std * jax.random.normal(
            k1, (conv_kernel_size, conv_kernel_size, cin, conv_out_channels),
            jnp.float32)
        b = 0.1 * jax.random.normal(k2, (conv_out_channels,), jnp.float32)
        params["convs"].append((w, b))
        cin = conv_out_channels
    key, k1 = jax.random.split(key)
    std = (2.0 / (conv_out_channels * 4)) ** 0.5
    params["deconv_w"] = std * jax.random.normal(
        k1, (2, 2, conv_out_channels, conv_out_channels), jnp.float32)
    params["deconv_b"] = jnp.zeros((conv_out_channels,), jnp.float32)
    key, k1 = jax.random.split(key)
    std = (2.0 / max(num_classes, 1)) ** 0.5
    params["logits_w"] = std * jax.random.normal(
        k1, (conv_out_channels, num_classes), jnp.float32)
    params["logits_b"] = jnp.zeros((num_classes,), jnp.float32)
    return params


# ---------------------------- reference (checks) -------------------------------

def _bf16(a):
    return a.astype(jnp.bfloat16).astype(jnp.float32)


def _reference(params, x_nchw, bf16_ops=False):
    """Pure-JAX reference. bf16_ops=True mirrors the kernel's MXU numerics
    (operands rounded to bf16, f32 accumulation)."""
    hp = jax.lax.Precision.HIGHEST
    q = _bf16 if bf16_ops else (lambda a: a)
    x = jnp.transpose(x_nchw, (0, 2, 3, 1)).astype(jnp.float32)
    for (w, b) in params["convs"]:
        x = jax.lax.conv_general_dilated(
            q(x), q(w), window_strides=(1, 1), padding="SAME",
            dimension_numbers=("NHWC", "HWIO", "NHWC"), precision=hp)
        x = jnp.maximum(x + b, 0.0)
    # ConvTranspose2d(k=2,s=2) == lhs-dilated conv with spatially flipped kernel
    wflip = params["deconv_w"][::-1, ::-1]
    x = jax.lax.conv_general_dilated(
        q(x), q(wflip), window_strides=(1, 1), padding=((1, 1), (1, 1)),
        lhs_dilation=(2, 2), dimension_numbers=("NHWC", "HWIO", "NHWC"),
        precision=hp)
    x = jnp.maximum(x + params["deconv_b"], 0.0)
    x = jnp.einsum("nhwc,ck->nhwk", q(x), q(params["logits_w"]),
                   precision=hp) + params["logits_b"]
    return jnp.transpose(x, (0, 3, 1, 2))


if __name__ == "__main__":
    key = jax.random.PRNGKey(0)
    kx, kp = jax.random.split(key)
    N, Cin, H, W = 2, 32, 8, 8
    x = jax.random.normal(kx, (N, Cin, H, W), jnp.float32)
    params = init_params(kp, num_convs=4, in_channels=Cin,
                         conv_out_channels=32, num_classes=1)

    prep = prepare_params(params)          # one-time weight packing (outside jit)
    fwd = jax.jit(fcn_mask_head_forward)
    out = jax.block_until_ready(fwd(prep, x))
    assert out.shape == (N, 1, 2 * H, 2 * W), out.shape

    # Primary check: parity with a reference using the same MXU numerics as the
    # kernel (bf16 operands, f32 accumulation) -> validates tap order, masks,
    # deconv interleave and biases tightly.
    ref_bf = jax.block_until_ready(_reference(params, x, bf16_ops=True))
    scale = float(jnp.max(jnp.abs(ref_bf))) + 1.0
    err = float(jnp.max(jnp.abs(out - ref_bf)))
    assert err <= 2e-3 * scale, f"bf16-ref max abs err {err} vs scale {scale}"

    # Secondary sanity check vs the full-f32 reference (bounds bf16 rounding).
    ref32 = jax.block_until_ready(_reference(params, x, bf16_ops=False))
    scale32 = float(jnp.max(jnp.abs(ref32))) + 1.0
    err32 = float(jnp.max(jnp.abs(out - ref32)))
    assert err32 <= 8e-2 * scale32, f"f32-ref max abs err {err32} vs {scale32}"

    print("KERNEL_OK")
</pallas_src>

<mosaic_0001>
module attributes {stable_mosaic.version = 11 : i64} {
  func.func @probe(%arg0: memref<8x128xf32, #tpu.memory_space<vmem>>, %arg1: memref<8x128xf32, #tpu.memory_space<vmem>>) attributes {dimension_semantics = [], scalar_prefetch = 0 : i64, scratch_operands = 0 : i64, tpu.core_type = #tpu.core_type<tc>} {
    %c0 = arith.constant 0 : index
    %c0_0 = arith.constant 0 : index
    %0 = vector.load %arg0[%c0, %c0_0] : memref<8x128xf32, #tpu.memory_space<vmem>>, vector<8x128xf32>
    %c1_i32 = arith.constant 1 : i32
    %1 = tpu.dynamic_rotate %0 by %c1_i32 dim 1 : vector<8x128xf32>, i32 -> vector<8x128xf32>
    %c0_1 = arith.constant 0 : index
    %c0_2 = arith.constant 0 : index
    %2 = vector.load %arg1[%c0_1, %c0_2] : memref<8x128xf32, #tpu.memory_space<vmem>>, vector<8x128xf32>
    tpu.vector_store %arg1[%c0_1, %c0_2], %1 {strides = array<i32>} : memref<8x128xf32, #tpu.memory_space<vmem>>, vector<8x128xf32>,
    return
  }
}

</mosaic_0001>

<llo_original>
// kernel: tpu_custom_call.1
$region0: #{tpu_custom_call.1}
  #allocation0 [shape = 'u32[]', space=smem, size = 0x4, offset = 0x4, fixed_abs, tag = 'smem constant byte address 0x4 - core index']
  #allocation1 [shape = 'u32[72,128]{1,0:T(1,128)}', space=vmem, size = 0x9000, scoped, tag = 'internal scratch']
  %s0 = inlined_call_operand.hbm [shape: f32[8,128], index: 0, kind: input, shape index: {}]
  %s1 = inlined_call_operand.hbm [shape: f32[8,128], index: 1, kind: output, shape index: {}]
  %s2 = sld [smem:[#allocation0]]
  $region18: #{tpu_custom_call.1} parent=0
    _
  %s4 = ssub.s32 1, %s2
  %s5 = scalar_select 0, %s4, %s2
  $region1: #{tpu_custom_call.1} parent=0
    #allocation2 [shape = 'u8[4096]{0}', space=vmem, size = 0x1000, scoped, tag = 'input window, operand 0, single buffered']
    #allocation3 [shape = 's32[1]{0}', space=sflag, size = 0x4, scoped, tag = 'scoped memory for tpu_custom_call.1']
    #allocation4 [shape = 's32[1]{0}', space=sflag, size = 0x4, scoped, tag = 'scoped memory for tpu_custom_call.1']
    #allocation5 [shape = 'u8[4096]{0}', space=vmem, size = 0x1000, scoped, tag = 'output window, operand 0, single buffered']
    %6 = vsyncpa [#allocation3], 0
    %7 = vsyncpa [#allocation4], 0
    // Predicated region
    $region2: #{tpu_custom_call.1} parent=1 // pred_check
      _
    $region3: #{tpu_custom_call.1} parent=1 // pred_check_branch
      %9 = sbr.rel (0) target = $region5
    $region4: #{tpu_custom_call.1} parent=1 // pred_region
      %11 = vsyncadd [#allocation3], 0
      %s13 = sshll.u32 %s0, 4
      %s14 = int_to_ptr.hbm [resolvable:$true] %s13
      %s15 = sshll.u32 [#allocation2], 4
      %s16 = int_to_ptr.vmem [resolvable:$true] %s15
      %18 = dma.hbm_to_vmem [thread:$0]  %s14, 128, %s16, [#allocation3]
    $region5: #{tpu_custom_call.1} parent=1 // pred_fallthru
      _
    // Predicated region
    $region6: #{tpu_custom_call.1} parent=1 // pred_check
      _
    $region7: #{tpu_custom_call.1} parent=1 // pred_check_branch
      %20 = sbr.rel (0) target = $region9
    $region8: #{tpu_custom_call.1} parent=1 // pred_region
      %22 = dma.done [#allocation3], 128
    $region9: #{tpu_custom_call.1} parent=1 // pred_fallthru
      _
    %v23 = vld [vmem:[#allocation2] sm:$0xff]
    %24 = vrot.lane.b32.xlu0 %v23, 1
    %v25 = vpop.permute.xlu0 %24
    %26 = vst [vmem:[#allocation5] sm:$0xff] %v25
    // Predicated region
    $region10: #{tpu_custom_call.1} parent=1 // pred_check
      _
    $region11: #{tpu_custom_call.1} parent=1 // pred_check_branch
      %28 = sbr.rel (0) target = $region13
    $region12: #{tpu_custom_call.1} parent=1 // pred_region
      %30 = vsyncadd [#allocation4], 0
      %s32 = sshll.u32 [#allocation5], 4
      %s33 = int_to_ptr.vmem [resolvable:$true] %s32
      %s34 = sshll.u32 %s1, 4
      %s35 = int_to_ptr.hbm [resolvable:$true] %s34
      %37 = dma.vmem_to_hbm [thread:$0]  %s33, 128, %s35, [#allocation4]
    $region13: #{tpu_custom_call.1} parent=1 // pred_fallthru
      _
    // Predicated region
    $region14: #{tpu_custom_call.1} parent=1 // pred_check
      _
    $region15: #{tpu_custom_call.1} parent=1 // pred_check_branch
      %39 = sbr.rel (0) target = $region17
    $region16: #{tpu_custom_call.1} parent=1 // pred_region
      %41 = dma.done [#allocation4], 128
    $region17: #{tpu_custom_call.1} parent=1 // pred_fallthru
      _
    %42 = vsyncpa [#allocation3], 1
    %43 = vsyncpa [#allocation4], 1

</llo_original>
